<compile_context>
chip_gen: v6e
topology: v6e:2x2x1
jax: 0.10.0
libtpu: 0.0.40
codegen_flags: <defaults>
</compile_context>

<pallas_src>
import functools

import jax
import jax.numpy as jnp
from jax.experimental import pallas as pl
from jax.experimental.pallas import tpu as pltpu

EPS = 1e-5  # InstanceNorm1d default eps


def _vmem_capacity_bytes():
    """Physical VMEM of the current TPU generation (conservative fallback)."""
    try:
        return int(pltpu.get_tpu_info().vmem_capacity_bytes)
    except Exception:
        return 64 << 20  # assume v7x's 64 MiB when not queryable


def _pick_channel_tile(out_ch, need_bytes, budget):
    """Largest sublane-aligned GLU-pair slab whose per-step VMEM fits budget."""
    cands = [t for t in (256, 128, 64, 32, 16, 8) if t <= out_ch and out_ch % t == 0]
    if not cands:
        cands = [out_ch]  # tiny / odd out_ch: single full-dim block (always legal)
    for t in cands:
        if need_bytes(t) <= budget:
            return t
    # Even the smallest slab blows the budget (very long sequences).
    # TODO(synk): add an L grid axis with a two-pass InstanceNorm (conv pass
    # accumulating per-channel sum/sumsq, normalize+GLU epilogue) so per-step
    # VMEM is bounded independent of L_out (needed for long audio on v7x).
    return cands[-1]


def _convglu_kernel(x_ref, w_ref, o_ref, x2col_ref, *, ks, sd, l_out):
    # x_ref    : (sd, C_in, L_ph)  polyphase, zero-padded input (one batch element)
    # w_ref    : (2*tc, K)         K = C_in*ks; rows [:tc] linear half, [tc:] gate half
    # o_ref    : (tc, L_out)
    # x2col_ref: (K, L_out)        persistent im2col scratch (compute dtype)
    tc = o_ref.shape[0]

    # Rebuild the im2col only when the batch block changes: the channel-slab
    # axis is innermost (fastest) and marked "arbitrary", so program_id(1)==0
    # is always the first slab step for every batch element on every core.
    @pl.when(pl.program_id(1) == 0)
    def _build_im2col():
        # Slice the Ref directly (contiguous per-tap windows; no full-plane loads).
        cols = [x_ref[k % sd, :, (k // sd):(k // sd) + l_out] for k in range(ks)]
        x2col_ref[...] = jnp.concatenate(cols, axis=0).astype(x2col_ref.dtype)

    # One fused MXU matmul over the full K = C_in*ks contraction (f32 accumulate).
    acc = jnp.dot(w_ref[...], x2col_ref[...],
                  preferred_element_type=jnp.float32)        # (2*tc, L_out)

    # InstanceNorm1d (affine=False): two-pass mean / var over the length axis.
    inv_l = 1.0 / l_out
    mean = jnp.sum(acc, axis=-1, keepdims=True) * inv_l
    centered = acc - mean
    var = jnp.sum(centered * centered, axis=-1, keepdims=True) * inv_l
    hn = centered * jax.lax.rsqrt(var + EPS)

    # GLU: matched (linear, gate) channel pairs live in the same block.
    o_ref[...] = (hn[:tc] * jax.nn.sigmoid(hn[tc:])).astype(o_ref.dtype)


def conv_glu_1d(x, weight, bias, *, ks, sd, compute_dtype=jnp.bfloat16):
    """x: (N, C_in, L); weight: (2*out_ch, C_in, ks); bias: (2*out_ch,)."""
    n, c_in, length = x.shape
    c2 = weight.shape[0]
    out_ch = c2 // 2
    assert ks >= sd, "padding=(ks-sd)//2 must be >= 0 (PyTorch rejects it otherwise)"
    pad = (ks - sd) // 2
    l_pad = length + 2 * pad
    l_out = (l_pad - ks) // sd + 1
    assert l_out >= 1, "sequence too short for this (ks, sd)"
    kdim = c_in * ks

    # Bias intentionally unused: InstanceNorm1d(affine=False, no running stats)
    # subtracts the per-channel mean, which cancels any per-channel constant bias.
    del bias

    # ---- layout glue (pure data movement, no math) --------------------------
    if sd == 1:
        l_ph = l_pad
        x_ph = jnp.pad(x, ((0, 0), (0, 0), (pad, pad)))[:, None]      # (N,1,Cin,Lpad)
    else:
        # Zero pad + polyphase-decompose so every in-kernel slice is contiguous.
        l_ph = -(-l_pad // sd)                                         # ceil(l_pad/sd)
        x_pr = jnp.pad(x, ((0, 0), (0, 0), (pad, pad + l_ph * sd - l_pad)))
        x_ph = x_pr.reshape(n, c_in, l_ph, sd).transpose(0, 3, 1, 2)   # (N,sd,Cin,Lph)
    x_ph = x_ph.astype(compute_dtype)   # bf16 in HBM halves x DMA traffic
    # TODO(synk): on v5e, fold the zero-pad into the kernel (Element-offset index
    # maps + edge masking) to remove this extra HBM round trip of x.

    comp_size = jnp.dtype(compute_dtype).itemsize
    out_size = jnp.dtype(x.dtype).itemsize

    # Per-step VMEM estimate: double-buffered blocks + single-buffered im2col
    # scratch + f32 in-kernel temporaries (acc / centered / hn).
    def need_bytes(tc_):
        x_blk = 2 * sd * c_in * l_ph * comp_size
        w_blk = 2 * (2 * tc_) * kdim * comp_size
        o_blk = 2 * tc_ * l_out * out_size
        scratch = kdim * l_out * comp_size
        temps = 3 * (2 * tc_) * l_out * 4
        return x_blk + w_blk + o_blk + scratch + temps

    # Generation-aware budget: ~75% of physical VMEM (<=48 MiB on v7x, more on
    # the 128 MiB parts), so big slabs are used where they fit.
    budget = max(min(_vmem_capacity_bytes() * 3 // 4, 112 << 20), 16 << 20)
    tc = _pick_channel_tile(out_ch, need_bytes, budget)
    n_ct = out_ch // tc
    vmem_limit = int(min(budget, max(need_bytes(tc) * 3 // 2 + (2 << 20), 16 << 20)))

    # Weight: (2*out_ch, C_in, ks) -> per-slab packed (n_ct, 2*tc, K).
    # Contraction rows are tap-major (k*C_in + c) to match the im2col stacking;
    # rows [:tc] of each slab are the linear half, [tc:] the matching gate half.
    w_t = weight.transpose(0, 2, 1).reshape(2, out_ch, kdim)
    w3 = (w_t.reshape(2, n_ct, tc, kdim)
              .transpose(1, 0, 2, 3)
              .reshape(n_ct, 2 * tc, kdim)
              .astype(compute_dtype))

    kernel = functools.partial(_convglu_kernel, ks=ks, sd=sd, l_out=l_out)

    cost = pl.CostEstimate(
        flops=2 * n * c2 * kdim * l_out + 10 * n * c2 * l_out,
        transcendentals=n * out_ch * l_out + n * c2,
        bytes_accessed=int(x_ph.size * x_ph.dtype.itemsize
                           + w3.size * w3.dtype.itemsize
                           + n * out_ch * l_out * out_size),
    )

    # TODO(synk): for weight-heavy / short-L configs, flip the grid to (n_ct, n)
    # so the weight block stays resident instead of x (pick by which is larger).
    # TODO(synk): when L_out << 128, pack batch elements (or pad L_out to a
    # multiple of 128) so output stores are lane-dense (vst vs vst.msk).
    return pl.pallas_call(
        kernel,
        out_shape=jax.ShapeDtypeStruct((n, out_ch, l_out), x.dtype),
        grid_spec=pltpu.PrefetchScalarGridSpec(
            num_scalar_prefetch=0,
            grid=(n, n_ct),                  # channel slab innermost: x block and
            in_specs=[                       # im2col scratch stay resident over it
                pl.BlockSpec((None, sd, c_in, l_ph), lambda b, c: (b, 0, 0, 0)),
                pl.BlockSpec((None, 2 * tc, kdim), lambda b, c: (c, 0, 0)),
            ],
            out_specs=pl.BlockSpec((None, tc, l_out), lambda b, c: (b, c, 0)),
            scratch_shapes=[pltpu.VMEM((kdim, l_out), compute_dtype)],
        ),
        compiler_params=pltpu.CompilerParams(
            # batch: independent, splittable across v7x's 2 TensorCores (N > 1);
            # channel slab: "arbitrary" because its steps reuse the im2col
            # scratch built at slab index 0 for the current batch element.
            dimension_semantics=("parallel", "arbitrary"),
            vmem_limit_bytes=vmem_limit,
        ),
        cost_estimate=cost,
    )(x_ph, w3)


def make_params(key, in_ch, out_ch, ks):
    """Deterministic parameter init mirroring the PyTorch module __init__."""
    c2 = out_ch * 2
    k_w, k_b = jax.random.split(key)
    # xavier_normal_ with gain=0.1 on Conv1d weight (out, in, ks):
    fan_in = in_ch * ks
    fan_out = c2 * ks
    std = 0.1 * (2.0 / (fan_in + fan_out)) ** 0.5
    v = std * jax.random.normal(k_w, (c2, in_ch, ks), dtype=jnp.float32)
    # weight_norm(dim=0): w = g * v / ||v||, with g initialized to ||v|| -> w == v.
    norm = jnp.sqrt(jnp.sum(v * v, axis=(1, 2), keepdims=True))
    w = norm * v / jnp.maximum(norm, 1e-12)
    # Conv1d default bias init: U(-1/sqrt(fan_in), 1/sqrt(fan_in)).
    bound = 1.0 / (fan_in ** 0.5)
    b = jax.random.uniform(k_b, (c2,), jnp.float32, -bound, bound)
    return w, b


def reference(x, weight, bias, *, ks, sd):
    """Pure-JAX reference of the same forward pass (bias included)."""
    pad = (ks - sd) // 2
    h = jax.lax.conv_general_dilated(
        x, weight, window_strides=(sd,), padding=[(pad, pad)],
        dimension_numbers=("NCH", "OIH", "NCH"),
    ) + bias[None, :, None]
    mean = jnp.mean(h, axis=-1, keepdims=True)
    var = jnp.mean((h - mean) ** 2, axis=-1, keepdims=True)
    hn = (h - mean) / jnp.sqrt(var + EPS)
    half = hn.shape[1] // 2
    return hn[:, :half] * jax.nn.sigmoid(hn[:, half:])


if __name__ == "__main__":
    key = jax.random.PRNGKey(0)
    keys = jax.random.split(key, 6)

    # Config 1: the module's nominal small shapes (stride 1).
    N, IN_CH, OUT_CH, KS, SD, L = 2, 4, 8, 3, 1, 16
    x = jax.random.normal(keys[0], (N, IN_CH, L), dtype=jnp.float32)
    w, b = make_params(keys[1], IN_CH, OUT_CH, KS)
    ref = reference(x, w, b, ks=KS, sd=SD)
    # Strict check: f32 MXU path must match the PyTorch-equivalent reference.
    out = jax.block_until_ready(
        conv_glu_1d(x, w, b, ks=KS, sd=SD, compute_dtype=jnp.float32))
    assert out.shape == ref.shape, (out.shape, ref.shape)
    assert jnp.allclose(out, ref, atol=1e-4, rtol=1e-4), float(
        jnp.max(jnp.abs(out - ref)))
    # Default fast path (bf16 MXU operands, f32 accumulation): loose tolerance.
    out_bf = jax.block_until_ready(conv_glu_1d(x, w, b, ks=KS, sd=SD))
    assert out_bf.shape == ref.shape
    assert jnp.allclose(out_bf, ref, atol=5e-2, rtol=5e-2), float(
        jnp.max(jnp.abs(out_bf - ref)))

    # Config 2: strided conv exercises the polyphase path.
    N2, IN2, OUT2, KS2, SD2, L2 = 2, 6, 16, 4, 2, 16
    x2 = jax.random.normal(keys[2], (N2, IN2, L2), dtype=jnp.float32)
    w2p, b2 = make_params(keys[3], IN2, OUT2, KS2)
    ref2 = reference(x2, w2p, b2, ks=KS2, sd=SD2)
    out2 = jax.block_until_ready(
        conv_glu_1d(x2, w2p, b2, ks=KS2, sd=SD2, compute_dtype=jnp.float32))
    assert out2.shape == ref2.shape, (out2.shape, ref2.shape)
    assert jnp.allclose(out2, ref2, atol=1e-4, rtol=1e-4), float(
        jnp.max(jnp.abs(out2 - ref2)))

    # Config 3: out_ch=96 -> tc=32, n_ct=3: exercises the im2col-scratch reuse
    # across channel-slab steps (c > 0 skips the rebuild).
    N3, IN3, OUT3, KS3, SD3, L3 = 2, 8, 96, 5, 1, 32
    x3 = jax.random.normal(keys[4], (N3, IN3, L3), dtype=jnp.float32)
    w3p, b3 = make_params(keys[5], IN3, OUT3, KS3)
    ref3 = reference(x3, w3p, b3, ks=KS3, sd=SD3)
    out3 = jax.block_until_ready(
        conv_glu_1d(x3, w3p, b3, ks=KS3, sd=SD3, compute_dtype=jnp.float32))
    assert out3.shape == ref3.shape, (out3.shape, ref3.shape)
    assert jnp.allclose(out3, ref3, atol=1e-4, rtol=1e-4), float(
        jnp.max(jnp.abs(out3 - ref3)))
    out3_bf = jax.block_until_ready(conv_glu_1d(x3, w3p, b3, ks=KS3, sd=SD3))
    assert jnp.allclose(out3_bf, ref3, atol=5e-2, rtol=5e-2), float(
        jnp.max(jnp.abs(out3_bf - ref3)))

    print("KERNEL_OK")
</pallas_src>

<mosaic_0001>
module attributes {stable_mosaic.version = 11 : i64} {
  func.func @_convglu_kernel(%arg0: i32, %arg1: i32, %arg2: memref<1x1x4x18xf32, #tpu.memory_space<vmem>>, %arg3: memref<1x16x12xf32, #tpu.memory_space<vmem>>, %arg4: memref<1x8x16xf32, #tpu.memory_space<vmem>>, %arg5: memref<12x16xf32, #tpu.memory_space<vmem>>) attributes {dimension_semantics = [#tpu.dimension_semantics<parallel>, #tpu.dimension_semantics<arbitrary>], iteration_bounds = array<i64: 2, 1>, scalar_prefetch = 0 : i64, scratch_operands = 1 : i64, tpu.core_type = #tpu.core_type<tc>, window_params = [{transform_indices = @transform_0, window_bounds = array<i64: 1, 1, 4, 18>}, {transform_indices = @transform_1, window_bounds = array<i64: 1, 16, 12>}, {transform_indices = @transform_2, window_bounds = array<i64: 1, 8, 16>}]} {
    %c0_i32 = arith.constant 0 : i32
    %0 = arith.cmpi eq, %arg1, %c0_i32 : i32
    %1 = arith.extui %0 : i1 to i32
    %c0_i32_0 = arith.constant 0 : i32
    %2 = arith.cmpi ne, %1, %c0_i32_0 : i32
    scf.if %2 {
      %c0_14 = arith.constant 0 : index
      %c0_15 = arith.constant 0 : index
      %c0_16 = arith.constant 0 : index
      %c0_17 = arith.constant 0 : index
      %34 = vector.load %arg2[%c0_14, %c0_15, %c0_16, %c0_17] : memref<1x1x4x18xf32, #tpu.memory_space<vmem>>, vector<1x1x4x16xf32>
      %35 = vector.shape_cast %34 : vector<1x1x4x16xf32> to vector<4x16xf32>
      %c0_18 = arith.constant 0 : index
      %c0_19 = arith.constant 0 : index
      %c0_20 = arith.constant 0 : index
      %c1 = arith.constant 1 : index
      %36 = vector.load %arg2[%c0_18, %c0_19, %c0_20, %c1] : memref<1x1x4x18xf32, #tpu.memory_space<vmem>>, vector<1x1x4x16xf32>
      %37 = vector.shape_cast %36 : vector<1x1x4x16xf32> to vector<4x16xf32>
      %c0_21 = arith.constant 0 : index
      %c0_22 = arith.constant 0 : index
      %c0_23 = arith.constant 0 : index
      %c2 = arith.constant 2 : index
      %38 = vector.load %arg2[%c0_21, %c0_22, %c0_23, %c2] : memref<1x1x4x18xf32, #tpu.memory_space<vmem>>, vector<1x1x4x16xf32>
      %39 = vector.shape_cast %38 : vector<1x1x4x16xf32> to vector<4x16xf32>
      %40 = tpu.concatenate %35, %37, %39 in 0 : vector<4x16xf32>, vector<4x16xf32>, vector<4x16xf32> -> vector<12x16xf32>
      %c0_24 = arith.constant 0 : index
      %c0_25 = arith.constant 0 : index
      %41 = vector.load %arg5[%c0_24, %c0_25] : memref<12x16xf32, #tpu.memory_space<vmem>>, vector<12x16xf32>
      tpu.vector_store %arg5[%c0_24, %c0_25], %40 {strides = array<i32>} : memref<12x16xf32, #tpu.memory_space<vmem>>, vector<12x16xf32>,
    } else {
    }
    %c0 = arith.constant 0 : index
    %c0_1 = arith.constant 0 : index
    %c0_2 = arith.constant 0 : index
    %3 = vector.load %arg3[%c0, %c0_1, %c0_2] : memref<1x16x12xf32, #tpu.memory_space<vmem>>, vector<1x16x12xf32>
    %4 = vector.shape_cast %3 : vector<1x16x12xf32> to vector<16x12xf32>
    %c0_3 = arith.constant 0 : index
    %c0_4 = arith.constant 0 : index
    %5 = vector.load %arg5[%c0_3, %c0_4] : memref<12x16xf32, #tpu.memory_space<vmem>>, vector<12x16xf32>
    %cst = arith.constant dense<0.000000e+00> : vector<16x16xf32>
    %6 = tpu.matmul %4, %5, %cst {dimension_numbers = #tpu.dot_dimension_numbers<[1], [0], [0], [1], [0, 0, 1, 1], [], []>} : vector<16x12xf32>, vector<12x16xf32>, vector<16x16xf32> -> vector<16x16xf32>
    %cst_5 = arith.constant dense<0.000000e+00> : vector<16xf32>
    %7 = vector.multi_reduction <add>, %6, %cst_5 [1] : vector<16x16xf32> to vector<16xf32>
    %8 = vector.shape_cast %7 : vector<16xf32> to vector<16x1xf32>
    %cst_6 = arith.constant 6.250000e-02 : f32
    %9 = vector.broadcast %cst_6 : f32 to vector<16x1xf32>
    %10 = arith.mulf %8, %9 : vector<16x1xf32>
    %11 = vector.broadcast %10 : vector<16x1xf32> to vector<16x16xf32>
    %12 = arith.subf %6, %11 : vector<16x16xf32>
    %13 = arith.mulf %12, %12 : vector<16x16xf32>
    %cst_7 = arith.constant dense<0.000000e+00> : vector<16xf32>
    %14 = vector.multi_reduction <add>, %13, %cst_7 [1] : vector<16x16xf32> to vector<16xf32>
    %15 = vector.shape_cast %14 : vector<16xf32> to vector<16x1xf32>
    %cst_8 = arith.constant 6.250000e-02 : f32
    %16 = vector.broadcast %cst_8 : f32 to vector<16x1xf32>
    %17 = arith.mulf %15, %16 : vector<16x1xf32>
    %cst_9 = arith.constant 9.99999974E-6 : f32
    %18 = vector.broadcast %cst_9 : f32 to vector<16x1xf32>
    %19 = arith.addf %17, %18 : vector<16x1xf32>
    %20 = math.rsqrt %19 : vector<16x1xf32>
    %21 = vector.broadcast %20 : vector<16x1xf32> to vector<16x16xf32>
    %22 = arith.mulf %12, %21 : vector<16x16xf32>
    %23 = vector.extract_strided_slice %22 {offsets = [0, 0], sizes = [8, 16], strides = [1, 1]} : vector<16x16xf32> to vector<8x16xf32>
    %24 = vector.extract_strided_slice %22 {offsets = [8, 0], sizes = [8, 16], strides = [1, 1]} : vector<16x16xf32> to vector<8x16xf32>
    %25 = arith.negf %24 : vector<8x16xf32>
    %26 = math.exp %25 : vector<8x16xf32>
    %cst_10 = arith.constant 1.000000e+00 : f32
    %27 = vector.broadcast %cst_10 : f32 to vector<8x16xf32>
    %28 = arith.addf %27, %26 : vector<8x16xf32>
    %29 = arith.divf %27, %28 : vector<8x16xf32>
    %30 = arith.mulf %23, %29 : vector<8x16xf32>
    %c0_11 = arith.constant 0 : index
    %c0_12 = arith.constant 0 : index
    %c0_13 = arith.constant 0 : index
    %31 = vector.load %arg4[%c0_11, %c0_12, %c0_13] : memref<1x8x16xf32, #tpu.memory_space<vmem>>, vector<1x8x16xf32>
    %32 = vector.shape_cast %31 : vector<1x8x16xf32> to vector<8x16xf32>
    %33 = vector.shape_cast %30 : vector<8x16xf32> to vector<1x8x16xf32>
    tpu.vector_store %arg4[%c0_11, %c0_12, %c0_13], %33 {strides = array<i32>} : memref<1x8x16xf32, #tpu.memory_space<vmem>>, vector<1x8x16xf32>,
    return
  }
  func.func @transform_0(%arg0: i32, %arg1: i32) -> (i32, i32, i32, i32) {
    %c0_i32 = arith.constant 0 : i32
    %c0_i32_0 = arith.constant 0 : i32
    %c0_i32_1 = arith.constant 0 : i32
    %c0_i32_2 = arith.constant 0 : i32
    return %arg0, %c0_i32, %c0_i32_0, %c0_i32_1 : i32, i32, i32, i32
  }
  func.func @transform_1(%arg0: i32, %arg1: i32) -> (i32, i32, i32) {
    %c0_i32 = arith.constant 0 : i32
    %c0_i32_0 = arith.constant 0 : i32
    %c0_i32_1 = arith.constant 0 : i32
    return %arg1, %c0_i32, %c0_i32_0 : i32, i32, i32
  }
  func.func @transform_2(%arg0: i32, %arg1: i32) -> (i32, i32, i32) {
    %c0_i32 = arith.constant 0 : i32
    %c0_i32_0 = arith.constant 0 : i32
    return %arg0, %arg1, %c0_i32 : i32, i32, i32
  }
}

</mosaic_0001>

<llo_original>
// kernel: tpu_custom_call.1
$region0: #{tpu_custom_call.1}
  #allocation0 [shape = 'u32[]', space=smem, size = 0x4, offset = 0x4, fixed_abs, tag = 'smem constant byte address 0x4 - core index']
  #allocation1 [shape = 'u32[144,128]{1,0:T(1,128)}', space=vmem, size = 0x12000, scoped, tag = 'internal scratch']
  #allocation2 [shape = 'f32[12,16]{1,0:T(8,128)}', space=vmem, size = 0x2000, scoped, tag = 'scratch operand']
  %s0 = inlined_call_operand.vmem [shape: f32[2,1,4,18], index: 0, kind: input, shape index: {}]
  %s1 = inlined_call_operand.vmem [shape: f32[1,16,12], index: 1, kind: input, shape index: {}]
  %s2 = inlined_call_operand.hbm [shape: f32[2,8,16], index: 2, kind: output, shape index: {}]
  %s3 = sld [smem:[#allocation0]]
  $region45: #{tpu_custom_call.1} parent=0
    _
  %s5 = ssub.s32 1, %s3
  %s6 = scalar_select 0, %s5, %s3
  $region1: #{tpu_custom_call.1} parent=0
    #allocation3 [shape = 'u8[8192]{0}', space=vmem, size = 0x2000, scoped, tag = 'output window, operand 0']
    #allocation4 [shape = 's32[2]{0}', space=sflag, size = 0x8, scoped, tag = 'scoped memory for tpu_custom_call.1']
    %7 = vsyncpa [#allocation4], 0
    %s8 = scalar_lea.sflag [#allocation4], 1
    %9 = vsyncpa %s8, 0
    loop: start=0, step=1, limit=4
    $region2: #{tpu_custom_call.1} parent=1 // loop_pre_header
      _
    $region3: #{tpu_custom_call.1} parent=1 // loop_header
      %s11 = sphi 0, %s15
      %p12 = scmp.ge.s32.totalorder %s11, 4
      %s18 = sphi 0, %s30
      %s19 = sphi 0, %s26
      %s20 = sphi 0, %s18
      %s21 = sphi 0, %s19
      %s22 = sphi 0, %s20
      %s23 = sphi 0, %s21
      %s33 = sphi 0, %s35
      %s36 = sphi 0, %s33
      %s37 = sphi 0, %s36
      %s53 = sphi 0, %s37
      %s59 = sphi 0, %s61
      %s62 = sphi 0, %s59
      %s63 = sphi 0, %s62
      %s79 = sphi 0, %s63
      %s87 = sphi 0, %s89
      %s90 = sphi 0, %s87
      %s91 = sphi 0, %s90
      %s107 = sphi 0, %s91
    $region4: #{tpu_custom_call.1} parent=1 // loop_header_branch
      %14 = sbr.rel (%p12) target = $region8
    $region5: #{tpu_custom_call.1} parent=1 // loop_body
      %s16 = ssub.s32 %s11, 1
      %s17 = ssub.s32 %s11, 2
      %s24 = sadd.s32 1, %s19
      %p25 = scmp.ge.s32.totalorder %s24, 1
      %s26 = scalar_select %p25, 0, %s24
      %s27 = sadd.s32 1, %s18
      %s28 = scalar_select %p25, %s27, %s18
      %p29 = scmp.ge.s32.totalorder %s28, 2
      %s30 = scalar_select %p29, 0, %s28
      %s31 = ssub.s32 %s18, %s30
      %p32 = scmp.eq.s32.totalorder %s31, 0
      %s34 = sadd.s32 %s33, 1
      %s35 = scalar_select %p32, %s33, %s34
      %p38 = pneg %p32
      %p39 = scmp.eq.s32.totalorder %s11, 1
      %p40 = por %p38, %p39
      %p41 = scmp.ne.s32.totalorder %s33, %s36
      %p42 = scmp.eq.s32.totalorder %s11, 0
      %p43 = por %p41, %p42
      %p44 = scmp.ne.s32.totalorder %s33, %s36
      %p45 = scmp.eq.s32.totalorder %s16, 1
      %p46 = por %p44, %p45
      %p47 = scmp.ne.s32.totalorder %s36, %s37
      %p48 = scmp.eq.s32.totalorder %s16, 0
      %p49 = por %p47, %p48
      %p50 = scmp.ne.s32.totalorder %s36, %s37
      %p51 = scmp.eq.s32.totalorder %s17, 1
      %p52 = por %p50, %p51
      %p54 = scmp.ne.s32.totalorder %s37, %s53
      %p55 = scmp.eq.s32.totalorder %s17, 0
      %p56 = por %p54, %p55
      %s57 = ssub.s32 %s19, %s26
      %p58 = scmp.eq.s32.totalorder %s57, 0
      %s60 = sadd.s32 %s59, 1
      %s61 = scalar_select %p58, %s59, %s60
      %p64 = pneg %p58
      %p65 = scmp.eq.s32.totalorder %s11, 1
      %p66 = por %p64, %p65
      %p67 = scmp.ne.s32.totalorder %s59, %s62
      %p68 = scmp.eq.s32.totalorder %s11, 0
      %p69 = por %p67, %p68
      %p70 = scmp.ne.s32.totalorder %s59, %s62
      %p71 = scmp.eq.s32.totalorder %s16, 1
      %p72 = por %p70, %p71
      %p73 = scmp.ne.s32.totalorder %s62, %s63
      %p74 = scmp.eq.s32.totalorder %s16, 0
      %p75 = por %p73, %p74
      %p76 = scmp.ne.s32.totalorder %s62, %s63
      %p77 = scmp.eq.s32.totalorder %s17, 1
      %p78 = por %p76, %p77
      %p80 = scmp.ne.s32.totalorder %s63, %s79
      %p81 = scmp.eq.s32.totalorder %s17, 0
      %p82 = por %p80, %p81
      %s83 = ssub.s32 %s18, %s30
      %s84 = ssub.s32 %s19, %s26
      %s85 = sor.u32 %s83, %s84
      %p86 = scmp.eq.s32.totalorder %s85, 0
      %s88 = sadd.s32 %s87, 1
      %s89 = scalar_select %p86, %s87, %s88
      %p92 = pneg %p86
      %p93 = scmp.eq.s32.totalorder %s11, 1
      %p94 = por %p92, %p93
      %p95 = scmp.ne.s32.totalorder %s87, %s90
      %p96 = scmp.eq.s32.totalorder %s11, 0
      %p97 = por %p95, %p96
      %p98 = scmp.ne.s32.totalorder %s87, %s90
      %p99 = scmp.eq.s32.totalorder %s16, 1
      %p100 = por %p98, %p99
      %p101 = scmp.ne.s32.totalorder %s90, %s91
      %p102 = scmp.eq.s32.totalorder %s16, 0
      %p103 = por %p101, %p102
      %p104 = scmp.ne.s32.totalorder %s90, %s91
      %p105 = scmp.eq.s32.totalorder %s17, 1
      %p106 = por %p104, %p105
      %p108 = scmp.ne.s32.totalorder %s91, %s107
      %p109 = scmp.eq.s32.totalorder %s17, 0
      %p110 = por %p108, %p109
      %p111 = scmp.le.s32.totalorder 1, %s11
      %p112 = scmp.lt.s32.totalorder %s11, 3
      %p113 = pnand %p111, %p112
      %p114 = pneg %p113
      // Predicated region
      $region9: #{tpu_custom_call.1} parent=5 // pred_check
        _
      $region10: #{tpu_custom_call.1} parent=5 // pred_check_branch
        %116 = sbr.rel (%p113) target = $region12
      $region11: #{tpu_custom_call.1} parent=5 // pred_region
        %s117 = ssub.s32 %s11, 1
        // Predicated region
        $region13: #{tpu_custom_call.1} parent=11 // pred_check
          %p118 = pneg %p75
        $region14: #{tpu_custom_call.1} parent=11 // pred_check_branch
          %120 = sbr.rel (%p118) target = $region16
        $region15: #{tpu_custom_call.1} parent=11 // pred_region
          %p121 = scmp.lt.s32.totalorder %s21, 0
          %s122 = scalar_select %p121, %s21, 0
          %s123 = smul.addr %s122, 2
          %s124 = smul.addr %s123, 8
          %s125 = scalar_lea.vmem %s1, %s124
        $region16: #{tpu_custom_call.1} parent=11 // pred_fallthru
          _
      $region12: #{tpu_custom_call.1} parent=5 // pred_fallthru
        _
      %p126 = scmp.lt.s32.totalorder %s11, 2
      // Predicated region
      $region17: #{tpu_custom_call.1} parent=5 // pred_check
        %p127 = pneg %p126
      $region18: #{tpu_custom_call.1} parent=5 // pred_check_branch
        %129 = sbr.rel (%p127) target = $region20
      $region19: #{tpu_custom_call.1} parent=5 // pred_region
        // Predicated region
        $region21: #{tpu_custom_call.1} parent=19 // pred_check
          %p130 = pneg %p43
        $region22: #{tpu_custom_call.1} parent=19 // pred_check_branch
          %132 = sbr.rel (%p130) target = $region24
        $region23: #{tpu_custom_call.1} parent=19 // pred_region
          %p133 = scmp.lt.s32.totalorder %s18, 1
          %s134 = scalar_select %p133, %s18, 1
          %s135 = smul.addr %s134, 4
          %s136 = scalar_lea.vmem %s0, %s135
        $region24: #{tpu_custom_call.1} parent=19 // pred_fallthru
          _
      $region20: #{tpu_custom_call.1} parent=5 // pred_fallthru
        _
      %p137 = scmp.le.s32.totalorder 1, %s11
      %p138 = scmp.lt.s32.totalorder %s11, 3
      %p139 = pnand %p137, %p138
      %p140 = pneg %p139
      // Predicated region
      $region25: #{tpu_custom_call.1} parent=5 // pred_check
        _
      $region26: #{tpu_custom_call.1} parent=5 // pred_check_branch
        %142 = sbr.rel (%p139) target = $region28
      $region27: #{tpu_custom_call.1} parent=5 // pred_region
        %s143 = ssub.s32 %s11, 1
        %p144 = scmp.lt.s32.totalorder %s20, 1
        %s145 = scalar_select %p144, %s20, 1
        %s146 = smul.addr %s145, 4
        %s147 = scalar_lea.vmem %s0, %s146
        %p148 = pneg %p49
        %p149 = pneg %p46
        %p150 = scmp.lt.s32.totalorder %s21, 0
        %s151 = scalar_select %p150, %s21, 0
        %s152 = smul.addr %s151, 2
        %s153 = smul.addr %s152, 8
        %s154 = scalar_lea.vmem %s1, %s153
        %p155 = pneg %p75
        %p156 = pneg %p72
        %p157 = pneg %p103
        %p158 = pneg %p100
        %s159 = sand.u32 %s90, 1
        %s160 = scalar_lea.sflag [#allocation4], %s159
        %s161 = sand.u32 %s90, 1
        %s162 = smul.addr %s161, 8
        %s163 = scalar_lea.vmem [#allocation3], %s162
        %p164 = scmp.lt.s32.totalorder %s20, 1
        %s165 = scalar_select %p164, %s20, 1
        %s166 = smul.addr %s165, 4
        %s167 = scalar_lea.vmem %s0, %s166
        %p168 = scmp.lt.s32.totalorder %s21, 0
        %s169 = scalar_select %p168, %s21, 0
        %s170 = smul.addr %s169, 2
        %s171 = smul.addr %s170, 8
        %s172 = scalar_lea.vmem %s1, %s171
        %p173 = scmp.eq.s32.totalorder %s21, 0
        // Predicated region
        $region29: #{tpu_custom_call.1} parent=27 // pred_check
          %p174 = pneg %p173
        $region30: #{tpu_custom_call.1} parent=27 // pred_check_branch
          %176 = sbr.rel (%p174) target = $region32
        $region31: #{tpu_custom_call.1} parent=27 // pred_region
          %v177 = vld [vmem:[%s167] sm:$0xf]
          %v179 = vrot.slane %v177, 4
          %180 = vrot.lane.b32.xlu0 %v179, 127
          %v181 = vpop.permute.xlu0 %180
          %183 = vrot.lane.b32.xlu0 %v177, 126
          %v184 = vpop.permute.xlu0 %183
          %vm186 = vcmask 1043456
          %v187 = vsel %vm186, %v177, %v181
          %vm188 = vcmask 130048
          %189 = vst.msk [vmem:[#allocation2] sm:$0xff] %vm188, %v187
          %vm190 = vcmask 125952
          %191 = vst.msk [vmem:[#allocation2 + $0x8] sm:$0xf] %vm190, %v184
        $region32: #{tpu_custom_call.1} parent=27 // pred_fallthru
          _
        %v192 = vld [vmem:[%s172] sm:$0xff]
        %v193 = vld [vmem:[%s172 + $0x8] sm:$0xff]
        %v194 = vld [vmem:[#allocation2] sm:$0xff]
        %v195 = vld [vmem:[#allocation2 + $0x8] sm:$0xf]
        %vm196 = vcmask 97280
        %v198 = vsel %vm196, %v192, 0
        %v201 = vsel %vm196, %v193, 0
        %vm203 = vcmask 1043456
        %v205 = vsel %vm203, %v195, 0
        %207 = vmatprep.subr.mxu0 0.0
        %208 = vmatpush1.msra.mxu0 0.0
        %209 = vmatprep.subr.mxu0 0.0
        %210 = vmatpush1.msra.mxu0 0.0
        %211 = vmatprep.subr.mxu0 0.0
        %212 = vmatpush1.msra.mxu0 0.0
        %213 = vmatprep.subr.mxu0 0.0
        %214 = vmatpush1.msra.mxu0 0.0
        %215 = vmatprep.subr.mxu0 0.0
        %216 = vmatpush1.msra.mxu0 0.0
        %217 = vmatprep.subr.mxu0 0.0
        %218 = vmatpush1.msra.mxu0 0.0
        %219 = vmatprep.subr.mxu0 0.0
        %220 = vmatpush1.msra.mxu0 0.0
        %221 = vmatprep.subr.mxu0 0.0
        %222 = vmatpush1.msra.mxu0 0.0
        %223 = vmatprep.subr.mxu0 0.0
        %224 = vmatpush1.msra.mxu0 0.0
        %225 = vmatprep.subr.mxu0 0.0
        %226 = vmatpush1.msra.mxu0 0.0
        %227 = vmatprep.subr.mxu0 0.0
        %228 = vmatpush1.msra.mxu0 0.0
        %229 = vmatprep.subr.mxu0 0.0
        %230 = vmatpush1.msra.mxu0 0.0
        %231 = vmatprep.subr.mxu0 0.0
        %232 = vmatpush1.msra.mxu0 0.0
        %233 = vmatprep.subr.mxu0 0.0
        %234 = vmatpush1.msra.mxu0 0.0
        %235 = vmatprep.subr.mxu0 0.0
        %236 = vmatpush1.msra.mxu0 %v205
        %237 = vmatprep.subr.mxu0 0.0
        %238 = vmatpush1.msra.mxu0 %v194
        %239 = vmatprep.subr.mxu0 0.0
        %240 = vmatpush2.msra.mxu0 0.0
        %241 = vmatprep.subr.mxu0 0.0
        %242 = vmatpush2.msra.mxu0 0.0
        %243 = vmatprep.subr.mxu0 0.0
        %244 = vmatpush2.msra.mxu0 0.0
        %245 = vmatprep.subr.mxu0 0.0
        %246 = vmatpush2.msra.mxu0 0.0
        %247 = vmatprep.subr.mxu0 0.0
        %248 = vmatpush2.msra.mxu0 0.0
        %249 = vmatprep.subr.mxu0 0.0
        %250 = vmatpush2.msra.mxu0 0.0
        %251 = vmatprep.subr.mxu0 0.0
        %252 = vmatpush2.msra.mxu0 0.0
        %253 = vmatprep.subr.mxu0 0.0
        %254 = vmatpush2.msra.mxu0 0.0
        %255 = vmatprep.subr.mxu0 0.0
        %256 = vmatpush2.msra.mxu0 0.0
        %257 = vmatprep.subr.mxu0 0.0
        %258 = vmatpush2.msra.mxu0 0.0
        %259 = vmatprep.subr.mxu0 0.0
        %260 = vmatpush2.msra.mxu0 0.0
        %261 = vmatprep.subr.mxu0 0.0
        %262 = vmatpush2.msra.mxu0 0.0
        %263 = vmatprep.subr.mxu0 0.0
        %264 = vmatpush2.msra.mxu0 0.0
        %265 = vmatprep.subr.mxu0 0.0
        %266 = vmatpush2.msra.mxu0 0.0
        %267 = vmatprep.subr.mxu0 0.0
        %268 = vmatpush2.msra.mxu0 0.0
        %269 = vmatprep.subr.mxu0 0.0
        %270 = vmatpush2.msra.mxu0 0.0
        %271 = vmatprep.mubr.f32.mxu0 0.0
        %272 = vmatmul.mubr.f32.gmra.mxu0 %v198
        %v273 = vpop.f32.mrf.mxu0
        %v274 = vadd.f32 0.0, %v273
        %v275 = vpop.f32.mrf.mxu0
        %276 = vmatprep.mubr.f32.mxu0 0.0
        %277 = vmatmul.mubr.f32.gmra.mxu0 %v201
        %v278 = vpop.f32.mrf.mxu0
        %v279 = vadd.f32 0.0, %v278
        %v280 = vpop.f32.mrf.mxu0
        %281 = vdwg.mxu0
        %vm282 = vcmask 130048
        %v283 = vsel %vm282, %v274, 0.0
        %284 = vadd.xlane.f32.xlu0 %v283
        %v285 = vpop.xlane.xlu0 %284
        %v286 = vsel %vm282, %v279, 0.0
        %287 = vadd.xlane.f32.xlu0 %v286
        %v288 = vpop.xlane.xlu0 %287
        %v289 = vmul.f32 %v285, 0.0625
        %v290 = vmul.f32 %v288, 0.0625
        %v291 = vsub.f32 %v274, %v289
        %v292 = vsub.f32 %v279, %v290
        %v293 = vmul.f32 %v291, %v291
        %v294 = vmul.f32 %v292, %v292
        %v295 = vsel %vm282, %v293, 0.0
        %296 = vadd.xlane.f32.xlu0 %v295
        %v297 = vpop.xlane.xlu0 %296
        %v298 = vsel %vm282, %v294, 0.0
        %299 = vadd.xlane.f32.xlu0 %v298
        %v300 = vpop.xlane.xlu0 %299
        %v301 = vmul.f32 %v297, 0.0625
        %v302 = vmul.f32 %v300, 0.0625
        %v303 = vadd.f32 %v301, 1e-05
        %v304 = vadd.f32 %v302, 1e-05
        %v305 = vrsqrt.pop %v303
        %v306 = vrsqrt.pop %v304
        %v307 = vmul.f32 %v291, %v305
        %v308 = vmul.f32 %v292, %v306
        %v309 = vxor.u32 %v308, 2147483648
        %v310 = vmul.f32 %v309, 1.442695
        %v311 = vpow.pop %v310
        %v312 = vadd.f32 %v311, 1.0
        %v313 = vrcp.pop %v312
        %v314 = vmul.f32 1.0, %v313
        %v315 = vmul.f32 %v307, %v314
        %316 = vst.msk [vmem:[%s163] sm:$0xff] %vm282, %v315
        %s317 = sand.u32 %s90, 1
        %s318 = scalar_lea.sflag [#allocation4], %s317
        %s319 = sand.u32 %s90, 1
        %s320 = smul.addr %s319, 8
        %s321 = scalar_lea.vmem [#allocation3], %s320
        // Predicated region
        $region33: #{tpu_custom_call.1} parent=27 // pred_check
          %p322 = pneg %p100
        $region34: #{tpu_custom_call.1} parent=27 // pred_check_branch
          %324 = sbr.rel (%p322) target = $region36
        $region35: #{tpu_custom_call.1} parent=27 // pred_region
          %s326 = ssub.s32 128, 128
          %327 = vsyncadd %s318, %s326
          %s328 = sadd.s32 %s21, %s20
          %s329 = smul.addr %s328, 128
          %s330 = scalar_lea.hbm %s2, %s329
          %s332 = sshll.u32 %s321, 4
          %s333 = int_to_ptr.vmem [resolvable:$true] %s332
          %335 = dma.vmem_to_hbm [thread:$0]  %s333, 128, %s330, %s318
        $region36: #{tpu_custom_call.1} parent=27 // pred_fallthru
          _
      $region28: #{tpu_custom_call.1} parent=5 // pred_fallthru
        _
      %p336 = scmp.le.s32.totalorder 2, %s11
      // Predicated region
      $region37: #{tpu_custom_call.1} parent=5 // pred_check
        %p337 = pneg %p336
      $region38: #{tpu_custom_call.1} parent=5 // pred_check_branch
        %339 = sbr.rel (%p337) target = $region40
      $region39: #{tpu_custom_call.1} parent=5 // pred_region
        %s340 = ssub.s32 %s11, 2
        // Predicated region
        $region41: #{tpu_custom_call.1} parent=39 // pred_check
          %p341 = pneg %p106
        $region42: #{tpu_custom_call.1} parent=39 // pred_check_branch
          %343 = sbr.rel (%p341) target = $region44
        $region43: #{tpu_custom_call.1} parent=39 // pred_region
          %s344 = sand.u32 %s91, 1
          %s345 = scalar_lea.sflag [#allocation4], %s344
          %s346 = sand.u32 %s91, 1
          %s347 = smul.addr %s346, 8
          %s348 = scalar_lea.vmem [#allocation3], %s347
          %349 = dma.done %s345, 128
        $region44: #{tpu_custom_call.1} parent=39 // pred_fallthru
          _
      $region40: #{tpu_custom_call.1} parent=5 // pred_fallthru
        _
    $region6: #{tpu_custom_call.1} parent=1 // loop_footer
      %s15 = sadd.s32 1, %s11
    $region7: #{tpu_custom_call.1} parent=1 // loop_footer_branch
      %10 = sbr.rel target = $region3
    $region8: #{tpu_custom_call.1} parent=1 // loop_exit
      _
    %350 = vsyncpa [#allocation4], 1
    %s351 = scalar_lea.sflag [#allocation4], 1
    %352 = vsyncpa %s351, 1

</llo_original>
